<compile_context>
chip_gen: v7x
topology: tpu7x:2x2x1
jax: 0.10.0
libtpu: 0.0.40
codegen_flags: <defaults>
</compile_context>

<pallas_src>
import functools

import jax
import jax.numpy as jnp
from jax.experimental import pallas as pl
from jax.experimental.pallas import tpu as pltpu


def _largest_divisor(n, cap):
    """Largest divisor of n that is <= cap (>= 1)."""
    cap = max(1, min(n, cap))
    for d in range(cap, 0, -1):
        if n % d == 0:
            return d
    return n


# ----------------------------------------------------------------------------
# Tiled linear kernel: o = x @ w + b
# ----------------------------------------------------------------------------

def _linear_kernel(x_ref, w_ref, b_ref, o_ref, acc_ref):
    @pl.when(pl.program_id(2) == 0)
    def _init():
        acc_ref[...] = jnp.zeros_like(acc_ref)

    acc_ref[...] += jnp.dot(x_ref[...], w_ref[...],
                            preferred_element_type=jnp.float32)

    @pl.when(pl.program_id(2) == pl.num_programs(2) - 1)
    def _finish():
        o_ref[...] = (acc_ref[...] + b_ref[...].astype(jnp.float32)).astype(o_ref.dtype)


def linear_pallas(x, w, b, *, tm=256, tn=256, tk=512):
    """x: (M, Cin), w: (Cin, Cout), b: (Cout,) -> (M, Cout), tiled over M/N/K."""
    M, K = x.shape
    Cout = w.shape[1]
    tm = _largest_divisor(M, tm)
    tn = _largest_divisor(Cout, tn)
    tk = _largest_divisor(K, tk)
    grid = (M // tm, Cout // tn, K // tk)
    return pl.pallas_call(
        _linear_kernel,
        out_shape=jax.ShapeDtypeStruct((M, Cout), x.dtype),
        grid=grid,
        in_specs=[
            pl.BlockSpec((tm, tk), lambda i, j, k: (i, k)),
            pl.BlockSpec((tk, tn), lambda i, j, k: (k, j)),
            pl.BlockSpec((1, tn), lambda i, j, k: (0, j)),
        ],
        out_specs=pl.BlockSpec((tm, tn), lambda i, j, k: (i, j)),
        scratch_shapes=[pltpu.VMEM((tm, tn), jnp.float32)],
        compiler_params=pltpu.CompilerParams(
            dimension_semantics=("parallel", "parallel", "arbitrary")),
    )(x, w, b.reshape(1, Cout))


# ----------------------------------------------------------------------------
# Fused attention kernel (scores + decomposed rel-pos bias + softmax + PV)
# ----------------------------------------------------------------------------

def _relpos_attn_kernel(q_ref, kT_ref, v_ref, relh_ref, relw_ref,
                        exph_ref, expw_ref, o_ref, *,
                        num_heads, head_dim, grid_h, grid_w):
    """One (batch, query-tile) step; all heads processed in a static loop.

    q_ref   : (tile_q, C)            pre-scaled queries, C = num_heads*head_dim
    kT_ref  : (C, N)                 keys, pre-transposed (lane-dense over N)
    v_ref   : (N, C)                 values
    relh_ref: (tile_q, num_heads*gh) per-query rel-pos height projections
    relw_ref: (tile_q, num_heads*gw) per-query rel-pos width  projections
    exph_ref: (gh, N)  exp_h[kh, n] = 1 if n // gw == kh  (constant)
    expw_ref: (gw, N)  exp_w[kw, n] = 1 if n %  gw == kw  (constant)
    o_ref   : (tile_q, C)
    """
    f32 = jnp.float32
    exp_h = exph_ref[...]
    exp_w = expw_ref[...]

    for h in range(num_heads):          # static unroll over heads
        d0 = h * head_dim
        qh = q_ref[:, d0:d0 + head_dim]            # (tq, D), already * scale
        kTh = kT_ref[d0:d0 + head_dim, :]          # (D, N)
        vh = v_ref[:, d0:d0 + head_dim]            # (N, D)

        # attention scores (MXU, native-dtype operands, f32 accumulation)
        s = jnp.dot(qh, kTh, preferred_element_type=f32)                    # (tq, N)

        # decomposed rel-pos bias, expanded to (tq, N) via constant one-hot matmuls
        s += jnp.dot(relh_ref[:, h * grid_h:(h + 1) * grid_h], exp_h,
                     preferred_element_type=f32)
        s += jnp.dot(relw_ref[:, h * grid_w:(h + 1) * grid_w], exp_w,
                     preferred_element_type=f32)

        # softmax over keys (f32); normalization via EUP reciprocal after the
        # PV matmul (cheaper than scaling the full (tq, N) probability tile)
        s -= jnp.max(s, axis=-1, keepdims=True)
        p = jnp.exp(s)
        l = jnp.sum(p, axis=-1, keepdims=True)
        oh = jnp.dot(p.astype(vh.dtype), vh, preferred_element_type=f32)    # (tq, D)
        oh *= pl.reciprocal(l, approx=True)

        o_ref[:, d0:d0 + head_dim] = oh.astype(o_ref.dtype)


def relpos_attention_pallas(q_scaled, kT, v, rel_h, rel_w, exp_h, exp_w,
                            num_heads, head_dim, grid_h, grid_w,
                            *, tile_q_target=256):
    """q_scaled/v: (B, N, C); kT: (B, C, N); rel_h/rel_w: (B, N, nh*gh / nh*gw)."""
    B, N, C = q_scaled.shape
    gh, gw = grid_h, grid_w
    tile_q = _largest_divisor(N, tile_q_target)
    num_q_tiles = N // tile_q

    kernel = functools.partial(_relpos_attn_kernel, num_heads=num_heads,
                               head_dim=head_dim, grid_h=gh, grid_w=gw)

    return pl.pallas_call(
        kernel,
        out_shape=jax.ShapeDtypeStruct((B, N, C), q_scaled.dtype),
        grid=(B, num_q_tiles),
        in_specs=[
            # query tile (changes every step)
            pl.BlockSpec((None, tile_q, C), lambda b, i: (b, i, 0)),
            # K^T / V: block index constant across the inner query-tile axis,
            # so the pipeline does not re-DMA them per tile
            pl.BlockSpec((None, C, N), lambda b, i: (b, 0, 0)),
            pl.BlockSpec((None, N, C), lambda b, i: (b, 0, 0)),
            # per-query rel-pos projections (follow the query tile)
            pl.BlockSpec((None, tile_q, num_heads * gh), lambda b, i: (b, i, 0)),
            pl.BlockSpec((None, tile_q, num_heads * gw), lambda b, i: (b, i, 0)),
            # constant one-hot expansion matrices (DMA'd once)
            pl.BlockSpec((gh, N), lambda b, i: (0, 0)),
            pl.BlockSpec((gw, N), lambda b, i: (0, 0)),
        ],
        out_specs=pl.BlockSpec((None, tile_q, C), lambda b, i: (b, i, 0)),
        compiler_params=pltpu.CompilerParams(
            dimension_semantics=("parallel", "parallel"),
            # explicit budget; keeps the kernel inside v7x's 64 MiB physical VMEM
            vmem_limit_bytes=64 * 1024 * 1024),
    )(q_scaled, kT, v, rel_h, rel_w, exp_h, exp_w)


# ----------------------------------------------------------------------------
# JAX glue (rel-pos tables, parameter setup, forward)
# ----------------------------------------------------------------------------

def get_rel_pos_table(q_size, k_size, rel_pos):
    """JAX port of get_rel_pos: (L, C) table -> (q_size, k_size, C)."""
    max_rel_dist = int(2 * max(q_size, k_size) - 1)
    if rel_pos.shape[0] != max_rel_dist:
        # TODO(synk): F.interpolate(mode='linear') resize path handled with
        # jax.image.resize in plain JAX (not a Pallas kernel); unused at base grid.
        rel_pos_resized = jax.image.resize(
            rel_pos.astype(jnp.float32), (max_rel_dist, rel_pos.shape[1]),
            method="linear").astype(rel_pos.dtype)
    else:
        rel_pos_resized = rel_pos
    q_coords = jnp.arange(q_size)[:, None] * max(k_size / q_size, 1.0)
    k_coords = jnp.arange(k_size)[None, :] * max(q_size / k_size, 1.0)
    rel = q_coords - k_coords + (k_size - 1) * max(q_size / k_size, 1.0)
    return rel_pos_resized[rel.astype(jnp.int32)]


def init_params(key, features_per_token, num_heads, base_patch_grid_hw):
    base_h, base_w = base_patch_grid_hw
    hd = features_per_token // num_heads
    num_h_idxs = 2 * base_h - 1
    num_w_idxs = 2 * base_w - 1
    k1, k2, k3, k4, k5, k6 = jax.random.split(key, 6)
    # Mirrors the (quirky) shapes in RelativePositionEncoder.__init__:
    #   rel_pos_h has num_w_idxs rows, rel_pos_w has num_h_idxs rows.
    return dict(
        w_qkv=0.02 * jax.random.normal(k1, (features_per_token, 3 * features_per_token), jnp.float32),
        b_qkv=0.02 * jax.random.normal(k2, (3 * features_per_token,), jnp.float32),
        w_proj=0.02 * jax.random.normal(k3, (features_per_token, features_per_token), jnp.float32),
        b_proj=0.02 * jax.random.normal(k4, (features_per_token,), jnp.float32),
        rel_pos_h=0.02 * jax.random.normal(k5, (num_w_idxs, hd), jnp.float32),
        rel_pos_w=0.02 * jax.random.normal(k6, (num_h_idxs, hd), jnp.float32),
    )


def rel_pos_attention_forward(x, params, num_heads):
    """Pallas-backed forward, semantics identical to RelPosAttention.forward."""
    B, H, W, C = x.shape
    hd = C // num_heads
    N = H * W
    scale = hd ** (-0.5)

    # qkv projection (tiled Pallas matmul); channel order inside 3C is [3][head][hd]
    qkv = linear_pallas(x.reshape(B * N, C), params["w_qkv"], params["b_qkv"])
    qkv = qkv.reshape(B, N, 3 * C)
    q = qkv[..., 0 * C:1 * C]          # (B, N, C)  head-major channels
    k = qkv[..., 1 * C:2 * C]
    v = qkv[..., 2 * C:3 * C]
    kT = jnp.swapaxes(k, 1, 2)         # (B, C, N)  lane-dense keys for the kernel

    # relative position tables (same-size path -> pure gather)
    Rh = get_rel_pos_table(H, H, params["rel_pos_h"])   # (H, H, hd)
    Rw = get_rel_pos_table(W, W, params["rel_pos_w"])   # (W, W, hd)

    # per-query rel-pos projections (small; XLA batched matmuls), unscaled q
    q5 = q.reshape(B, H, W, num_heads, hd)
    rel_h = jnp.einsum("byxnd,ykd->byxnk", q5, Rh).reshape(B, N, num_heads * H)
    rel_w = jnp.einsum("byxnd,xkd->byxnk", q5, Rw).reshape(B, N, num_heads * W)

    # constant one-hot expansion matrices (built once; DMA'd once into the kernel)
    n_idx = jnp.arange(N)
    exp_h = (n_idx[None, :] // W == jnp.arange(H)[:, None]).astype(rel_h.dtype)  # (H, N)
    exp_w = (n_idx[None, :] % W == jnp.arange(W)[:, None]).astype(rel_w.dtype)   # (W, N)

    # fused attention: scores + rel-pos bias + softmax + value aggregation
    o = relpos_attention_pallas(q * scale, kT, v, rel_h, rel_w, exp_h, exp_w,
                                num_heads, hd, H, W)            # (B, N, C)

    # output projection (tiled Pallas matmul); channel layout already matches
    o = linear_pallas(o.reshape(B * N, C), params["w_proj"], params["b_proj"])
    return o.reshape(B, H, W, C)


def reference_forward(x, params, num_heads):
    """Pure-JAX reference mirroring the PyTorch module exactly."""
    B, H, W, C = x.shape
    hd = C // num_heads
    N = H * W
    scale = hd ** (-0.5)

    qkv = jnp.einsum("bhwc,cd->bhwd", x, params["w_qkv"]) + params["b_qkv"]
    qkv = (qkv.reshape(B, N, 3, num_heads, hd)
              .transpose(2, 0, 3, 1, 4)
              .reshape(3, B * num_heads, N, hd))
    q, k, v = qkv[0], qkv[1], qkv[2]

    attn = (q * scale) @ jnp.swapaxes(k, -2, -1)                 # (B*nh, N, N)

    Rh = get_rel_pos_table(H, H, params["rel_pos_h"])
    Rw = get_rel_pos_table(W, W, params["rel_pos_w"])
    r_q = q.reshape(B * num_heads, H, W, hd)
    rel_h = jnp.einsum("bhwc,hkc->bhwk", r_q, Rh)
    rel_w = jnp.einsum("bhwc,wkc->bhwk", r_q, Rw)
    attn = (attn.reshape(B * num_heads, H, W, H, W)
            + rel_h[:, :, :, :, None]
            + rel_w[:, :, :, None, :]).reshape(B * num_heads, N, N)

    attn = jax.nn.softmax(attn, axis=-1)
    o = attn @ v
    o = (o.reshape(B, num_heads, H, W, hd)
           .transpose(0, 2, 3, 1, 4)
           .reshape(B, H, W, C))
    o = jnp.einsum("bhwc,cd->bhwd", o, params["w_proj"]) + params["b_proj"]
    return o


# ----------------------------------------------------------------------------
# main
# ----------------------------------------------------------------------------

if __name__ == "__main__":
    # small config: features_per_token=32, num_heads=2 (head_dim=16), 8x8 patch grid
    B, H, W = 2, 8, 8
    features_per_token, num_heads = 32, 2
    base_patch_grid_hw = (H, W)

    key = jax.random.PRNGKey(0)
    kx, kp = jax.random.split(key)
    x = jax.random.normal(kx, (B, H, W, features_per_token), jnp.float32)
    params = init_params(kp, features_per_token, num_heads, base_patch_grid_hw)

    out = rel_pos_attention_forward(x, params, num_heads)
    out = jax.block_until_ready(out)

    ref = jax.block_until_ready(reference_forward(x, params, num_heads))
    max_err = float(jnp.max(jnp.abs(out - ref)))
    assert out.shape == (B, H, W, features_per_token)
    assert max_err < 1e-3, f"mismatch vs reference: {max_err}"

    print("KERNEL_OK")
</pallas_src>

<mosaic_0001>
module attributes {stable_mosaic.version = 11 : i64} {
  func.func @_linear_kernel(%arg0: i32, %arg1: i32, %arg2: i32, %arg3: memref<128x32xf32, #tpu.memory_space<vmem>>, %arg4: memref<32x96xf32, #tpu.memory_space<vmem>>, %arg5: memref<1x96xf32, #tpu.memory_space<vmem>>, %arg6: memref<128x96xf32, #tpu.memory_space<vmem>>, %arg7: memref<128x96xf32, #tpu.memory_space<vmem>>) attributes {dimension_semantics = [#tpu.dimension_semantics<parallel>, #tpu.dimension_semantics<parallel>, #tpu.dimension_semantics<arbitrary>], iteration_bounds = array<i64: 1, 1, 1>, scalar_prefetch = 0 : i64, scratch_operands = 1 : i64, tpu.core_type = #tpu.core_type<tc>, window_params = [{transform_indices = @transform_0, window_bounds = array<i64: 128, 32>}, {transform_indices = @transform_1, window_bounds = array<i64: 32, 96>}, {transform_indices = @transform_2, window_bounds = array<i64: 1, 96>}, {transform_indices = @transform_3, window_bounds = array<i64: 128, 96>}]} {
    %c0_i32 = arith.constant 0 : i32
    %0 = arith.cmpi eq, %arg2, %c0_i32 : i32
    %1 = arith.extui %0 : i1 to i32
    %c0_i32_0 = arith.constant 0 : i32
    %2 = arith.cmpi ne, %1, %c0_i32_0 : i32
    scf.if %2 {
      %cst_10 = arith.constant 0.000000e+00 : f32
      %12 = vector.broadcast %cst_10 : f32 to vector<128x96xf32>
      %c0_11 = arith.constant 0 : index
      %c0_12 = arith.constant 0 : index
      %13 = vector.load %arg7[%c0_11, %c0_12] : memref<128x96xf32, #tpu.memory_space<vmem>>, vector<128x96xf32>
      tpu.vector_store %arg7[%c0_11, %c0_12], %12 {strides = array<i32>} : memref<128x96xf32, #tpu.memory_space<vmem>>, vector<128x96xf32>,
    } else {
    }
    %c0 = arith.constant 0 : index
    %c0_1 = arith.constant 0 : index
    %3 = vector.load %arg7[%c0, %c0_1] : memref<128x96xf32, #tpu.memory_space<vmem>>, vector<128x96xf32>
    %c0_2 = arith.constant 0 : index
    %c0_3 = arith.constant 0 : index
    %4 = vector.load %arg3[%c0_2, %c0_3] : memref<128x32xf32, #tpu.memory_space<vmem>>, vector<128x32xf32>
    %c0_4 = arith.constant 0 : index
    %c0_5 = arith.constant 0 : index
    %5 = vector.load %arg4[%c0_4, %c0_5] : memref<32x96xf32, #tpu.memory_space<vmem>>, vector<32x96xf32>
    %cst = arith.constant dense<0.000000e+00> : vector<128x96xf32>
    %6 = tpu.matmul %4, %5, %cst {dimension_numbers = #tpu.dot_dimension_numbers<[1], [0], [0], [1], [0, 0, 1, 1], [], []>} : vector<128x32xf32>, vector<32x96xf32>, vector<128x96xf32> -> vector<128x96xf32>
    %7 = arith.addf %3, %6 : vector<128x96xf32>
    %c0_6 = arith.constant 0 : index
    %c0_7 = arith.constant 0 : index
    %8 = vector.load %arg7[%c0_6, %c0_7] : memref<128x96xf32, #tpu.memory_space<vmem>>, vector<128x96xf32>
    tpu.vector_store %arg7[%c0_6, %c0_7], %7 {strides = array<i32>} : memref<128x96xf32, #tpu.memory_space<vmem>>, vector<128x96xf32>,
    %c0_i32_8 = arith.constant 0 : i32
    %9 = arith.cmpi eq, %arg2, %c0_i32_8 : i32
    %10 = arith.extui %9 : i1 to i32
    %c0_i32_9 = arith.constant 0 : i32
    %11 = arith.cmpi ne, %10, %c0_i32_9 : i32
    scf.if %11 {
      %c0_10 = arith.constant 0 : index
      %c0_11 = arith.constant 0 : index
      %12 = vector.load %arg7[%c0_10, %c0_11] : memref<128x96xf32, #tpu.memory_space<vmem>>, vector<128x96xf32>
      %c0_12 = arith.constant 0 : index
      %c0_13 = arith.constant 0 : index
      %13 = vector.load %arg5[%c0_12, %c0_13] : memref<1x96xf32, #tpu.memory_space<vmem>>, vector<1x96xf32>
      %14 = vector.broadcast %13 : vector<1x96xf32> to vector<128x96xf32>
      %15 = arith.addf %12, %14 : vector<128x96xf32>
      %c0_14 = arith.constant 0 : index
      %c0_15 = arith.constant 0 : index
      %16 = vector.load %arg6[%c0_14, %c0_15] : memref<128x96xf32, #tpu.memory_space<vmem>>, vector<128x96xf32>
      tpu.vector_store %arg6[%c0_14, %c0_15], %15 {strides = array<i32>} : memref<128x96xf32, #tpu.memory_space<vmem>>, vector<128x96xf32>,
    } else {
    }
    return
  }
  func.func @transform_0(%arg0: i32, %arg1: i32, %arg2: i32) -> (i32, i32) {
    %c0_i32 = arith.constant 0 : i32
    return %arg0, %arg2 : i32, i32
  }
  func.func @transform_1(%arg0: i32, %arg1: i32, %arg2: i32) -> (i32, i32) {
    %c0_i32 = arith.constant 0 : i32
    return %arg2, %arg1 : i32, i32
  }
  func.func @transform_2(%arg0: i32, %arg1: i32, %arg2: i32) -> (i32, i32) {
    %c0_i32 = arith.constant 0 : i32
    %c0_i32_0 = arith.constant 0 : i32
    return %c0_i32, %arg1 : i32, i32
  }
  func.func @transform_3(%arg0: i32, %arg1: i32, %arg2: i32) -> (i32, i32) {
    %c0_i32 = arith.constant 0 : i32
    return %arg0, %arg1 : i32, i32
  }
}

</mosaic_0001>

<llo_original>
// kernel: tpu_custom_call.1
$region0: #{tpu_custom_call.1}
  #allocation0 [shape = 'u32[]', space=smem, size = 0x4, offset = 0x4, fixed_abs, tag = 'smem constant byte address 0x4 - core index']
  #allocation1 [shape = 'u32[144,128]{1,0:T(1,128)}', space=vmem, size = 0x12000, scoped, tag = 'internal scratch']
  #allocation2 [shape = 'f32[128,96]{1,0:T(8,128)}', space=vmem, size = 0x10000, scoped, tag = 'scratch operand']
  %s0 = inlined_call_operand.vmem [shape: f32[128,32], index: 0, kind: input, shape index: {}]
  %s1 = inlined_call_operand.vmem [shape: f32[32,96], index: 1, kind: input, shape index: {}]
  %s2 = inlined_call_operand.vmem [shape: f32[1,96], index: 2, kind: input, shape index: {}]
  %s3 = inlined_call_operand.vmem [shape: f32[128,96], index: 3, kind: output, shape index: {}]
  %s4 = sld [smem:[#allocation0]]
  $region30: #{tpu_custom_call.1} parent=0
    _
  %s6 = ssub.s32 1, %s4
  %s7 = scalar_select 0, %s6, %s4
  // Predicated region
  $region2: #{tpu_custom_call.1} parent=0 // pred_check
    _
  $region3: #{tpu_custom_call.1} parent=0 // pred_check_branch
    %9 = sbr.rel (0) target = $region5
  $region4: #{tpu_custom_call.1} parent=0 // pred_region
    _
  $region5: #{tpu_custom_call.1} parent=0 // pred_fallthru
    _
  // Predicated region
  $region6: #{tpu_custom_call.1} parent=0 // pred_check
    _
  $region7: #{tpu_custom_call.1} parent=0 // pred_check_branch
    %11 = sbr.rel (0) target = $region9
  $region8: #{tpu_custom_call.1} parent=0 // pred_region
    _
  $region9: #{tpu_custom_call.1} parent=0 // pred_fallthru
    _
  // Predicated region
  $region10: #{tpu_custom_call.1} parent=0 // pred_check
    _
  $region11: #{tpu_custom_call.1} parent=0 // pred_check_branch
    %13 = sbr.rel (0) target = $region13
  $region12: #{tpu_custom_call.1} parent=0 // pred_region
    _
  $region13: #{tpu_custom_call.1} parent=0 // pred_fallthru
    _
  %p14 = scmp.eq.s32.totalorder 0, 0
  // Predicated region
  $region14: #{tpu_custom_call.1} parent=0 // pred_check
    %p15 = pneg %p14
  $region15: #{tpu_custom_call.1} parent=0 // pred_check_branch
    %17 = sbr.rel (%p15) target = $region17
  $region16: #{tpu_custom_call.1} parent=0 // pred_region
    %vm18 = vcmask 785408
    %19 = vst.msk [vmem:[#allocation2] sm:$0xff] %vm18, 0.0
    %20 = vst.msk [vmem:[#allocation2 + $0x8] sm:$0xff] %vm18, 0.0
    %21 = vst.msk [vmem:[#allocation2 + $0x10] sm:$0xff] %vm18, 0.0
    %22 = vst.msk [vmem:[#allocation2 + $0x18] sm:$0xff] %vm18, 0.0
    %23 = vst.msk [vmem:[#allocation2 + $0x20] sm:$0xff] %vm18, 0.0
    %24 = vst.msk [vmem:[#allocation2 + $0x28] sm:$0xff] %vm18, 0.0
    %25 = vst.msk [vmem:[#allocation2 + $0x30] sm:$0xff] %vm18, 0.0
    %26 = vst.msk [vmem:[#allocation2 + $0x38] sm:$0xff] %vm18, 0.0
    %27 = vst.msk [vmem:[#allocation2 + $0x40] sm:$0xff] %vm18, 0.0
    %28 = vst.msk [vmem:[#allocation2 + $0x48] sm:$0xff] %vm18, 0.0
    %29 = vst.msk [vmem:[#allocation2 + $0x50] sm:$0xff] %vm18, 0.0
    %30 = vst.msk [vmem:[#allocation2 + $0x58] sm:$0xff] %vm18, 0.0
    %31 = vst.msk [vmem:[#allocation2 + $0x60] sm:$0xff] %vm18, 0.0
    %32 = vst.msk [vmem:[#allocation2 + $0x68] sm:$0xff] %vm18, 0.0
    %33 = vst.msk [vmem:[#allocation2 + $0x70] sm:$0xff] %vm18, 0.0
    %34 = vst.msk [vmem:[#allocation2 + $0x78] sm:$0xff] %vm18, 0.0
  $region17: #{tpu_custom_call.1} parent=0 // pred_fallthru
    _
  %v35 = vld [vmem:[#allocation2] sm:$0xff]
  %v36 = vld [vmem:[#allocation2 + $0x8] sm:$0xff]
  %v37 = vld [vmem:[#allocation2 + $0x10] sm:$0xff]
  %v38 = vld [vmem:[#allocation2 + $0x18] sm:$0xff]
  %v39 = vld [vmem:[#allocation2 + $0x20] sm:$0xff]
  %v40 = vld [vmem:[#allocation2 + $0x28] sm:$0xff]
  %v41 = vld [vmem:[#allocation2 + $0x30] sm:$0xff]
  %v42 = vld [vmem:[#allocation2 + $0x38] sm:$0xff]
  %v43 = vld [vmem:[#allocation2 + $0x40] sm:$0xff]
  %v44 = vld [vmem:[#allocation2 + $0x48] sm:$0xff]
  %v45 = vld [vmem:[#allocation2 + $0x50] sm:$0xff]
  %v46 = vld [vmem:[#allocation2 + $0x58] sm:$0xff]
  %v47 = vld [vmem:[#allocation2 + $0x60] sm:$0xff]
  %v48 = vld [vmem:[#allocation2 + $0x68] sm:$0xff]
  %v49 = vld [vmem:[#allocation2 + $0x70] sm:$0xff]
  %v50 = vld [vmem:[#allocation2 + $0x78] sm:$0xff]
  %v51 = vld [vmem:[%s0] sm:$0xff]
  %v52 = vld [vmem:[%s0 + $0x8] sm:$0xff]
  %v53 = vld [vmem:[%s0 + $0x10] sm:$0xff]
  %v54 = vld [vmem:[%s0 + $0x18] sm:$0xff]
  %v55 = vld [vmem:[%s0 + $0x20] sm:$0xff]
  %v56 = vld [vmem:[%s0 + $0x28] sm:$0xff]
  %v57 = vld [vmem:[%s0 + $0x30] sm:$0xff]
  %v58 = vld [vmem:[%s0 + $0x38] sm:$0xff]
  %v59 = vld [vmem:[%s0 + $0x40] sm:$0xff]
  %v60 = vld [vmem:[%s0 + $0x48] sm:$0xff]
  %v61 = vld [vmem:[%s0 + $0x50] sm:$0xff]
  %v62 = vld [vmem:[%s0 + $0x58] sm:$0xff]
  %v63 = vld [vmem:[%s0 + $0x60] sm:$0xff]
  %v64 = vld [vmem:[%s0 + $0x68] sm:$0xff]
  %v65 = vld [vmem:[%s0 + $0x70] sm:$0xff]
  %v66 = vld [vmem:[%s0 + $0x78] sm:$0xff]
  %v67 = vld [vmem:[%s1] sm:$0xff]
  %v68 = vld [vmem:[%s1 + $0x8] sm:$0xff]
  %v69 = vld [vmem:[%s1 + $0x10] sm:$0xff]
  %v70 = vld [vmem:[%s1 + $0x18] sm:$0xff]
  %vm71 = vcmask 261120
  %v73 = vsel %vm71, %v51, 0
  %v76 = vsel %vm71, %v52, 0
  %v79 = vsel %vm71, %v53, 0
  %v82 = vsel %vm71, %v54, 0
  %v85 = vsel %vm71, %v55, 0
  %v88 = vsel %vm71, %v56, 0
  %v91 = vsel %vm71, %v57, 0
  %v94 = vsel %vm71, %v58, 0
  %v97 = vsel %vm71, %v59, 0
  %v100 = vsel %vm71, %v60, 0
  %v103 = vsel %vm71, %v61, 0
  %v106 = vsel %vm71, %v62, 0
  %v109 = vsel %vm71, %v63, 0
  %v112 = vsel %vm71, %v64, 0
  %v115 = vsel %vm71, %v65, 0
  %v118 = vsel %vm71, %v66, 0
  %120 = vmatprep.subr.mxu0 0.0
  %121 = vmatpush1.msra.mxu0 %v67
  %122 = vmatprep.subr.mxu0 0.0
  %123 = vmatpush1.msra.mxu0 %v68
  %124 = vmatprep.subr.mxu0 0.0
  %125 = vmatpush1.msra.mxu0 %v69
  %126 = vmatprep.subr.mxu0 0.0
  %127 = vmatpush1.msra.mxu0 %v70
  %128 = vmatprep.subr.mxu0 0.0
  %129 = vmatpush1.msra.mxu0 0.0
  %130 = vmatprep.subr.mxu0 0.0
  %131 = vmatpush1.msra.mxu0 0.0
  %132 = vmatprep.subr.mxu0 0.0
  %133 = vmatpush1.msra.mxu0 0.0
  %134 = vmatprep.subr.mxu0 0.0
  %135 = vmatpush1.msra.mxu0 0.0
  %136 = vmatprep.subr.mxu0 0.0
  %137 = vmatpush1.msra.mxu0 0.0
  %138 = vmatprep.subr.mxu0 0.0
  %139 = vmatpush1.msra.mxu0 0.0
  %140 = vmatprep.subr.mxu0 0.0
  %141 = vmatpush1.msra.mxu0 0.0
  %142 = vmatprep.subr.mxu0 0.0
  %143 = vmatpush1.msra.mxu0 0.0
  %144 = vmatprep.subr.mxu0 0.0
  %145 = vmatpush1.msra.mxu0 0.0
  %146 = vmatprep.subr.mxu0 0.0
  %147 = vmatpush1.msra.mxu0 0.0
  %148 = vmatprep.subr.mxu0 0.0
  %149 = vmatpush1.msra.mxu0 0.0
  %150 = vmatprep.subr.mxu0 0.0
  %151 = vmatpush1.msra.mxu0 0.0
  %152 = vmatprep.subr.mxu0 0.0
  %153 = vmatpush1.msra.mxu0 0.0
  %154 = vmatprep.subr.mxu0 0.0
  %155 = vmatpush1.msra.mxu0 0.0
  %156 = vmatprep.subr.mxu0 0.0
  %157 = vmatpush1.msra.mxu0 0.0
  %158 = vmatprep.subr.mxu0 0.0
  %159 = vmatpush1.msra.mxu0 0.0
  %160 = vmatprep.subr.mxu0 0.0
  %161 = vmatpush1.msra.mxu0 0.0
  %162 = vmatprep.subr.mxu0 0.0
  %163 = vmatpush1.msra.mxu0 0.0
  %164 = vmatprep.subr.mxu0 0.0
  %165 = vmatpush1.msra.mxu0 0.0
  %166 = vmatprep.subr.mxu0 0.0
  %167 = vmatpush1.msra.mxu0 0.0
  %168 = vmatprep.subr.mxu0 0.0
  %169 = vmatpush1.msra.mxu0 0.0
  %170 = vmatprep.subr.mxu0 0.0
  %171 = vmatpush1.msra.mxu0 0.0
  %172 = vmatprep.subr.mxu0 0.0
  %173 = vmatpush1.msra.mxu0 0.0
  %174 = vmatprep.subr.mxu0 0.0
  %175 = vmatpush1.msra.mxu0 0.0
  %176 = vmatprep.subr.mxu0 0.0
  %177 = vmatpush1.msra.mxu0 0.0
  %178 = vmatprep.subr.mxu0 0.0
  %179 = vmatpush1.msra.mxu0 0.0
  %180 = vmatprep.subr.mxu0 0.0
  %181 = vmatpush1.msra.mxu0 0.0
  %182 = vmatprep.subr.mxu0 0.0
  %183 = vmatpush1.msra.mxu0 0.0
  %184 = vmatprep.mubr.f32.mxu0 0.0
  %185 = vmatmul.mubr.f32.gmra.mrb[0].mxu0 %v73
  %v186 = vpop.f32.mrb[0].mxu0
  %v187 = vadd.f32 0.0, %v186
  %v188 = vpop.f32.mrb[0].mxu0
  %189 = vmatprep.mubr.f32.mxu0 0.0
  %190 = vmatmul.mubr.f32.gmra.mrb[0].mxu0 %v76
  %v191 = vpop.f32.mrb[0].mxu0
  %v192 = vadd.f32 0.0, %v191
  %v193 = vpop.f32.mrb[0].mxu0
  %194 = vmatprep.mubr.f32.mxu0 0.0
  %195 = vmatmul.mubr.f32.gmra.mrb[0].mxu0 %v79
  %v196 = vpop.f32.mrb[0].mxu0
  %v197 = vadd.f32 0.0, %v196
  %v198 = vpop.f32.mrb[0].mxu0
  %199 = vmatprep.mubr.f32.mxu0 0.0
  %200 = vmatmul.mubr.f32.gmra.mrb[0].mxu0 %v82
  %v201 = vpop.f32.mrb[0].mxu0
  %v202 = vadd.f32 0.0, %v201
  %v203 = vpop.f32.mrb[0].mxu0
  %204 = vmatprep.mubr.f32.mxu0 0.0
  %205 = vmatmul.mubr.f32.gmra.mrb[0].mxu0 %v85
  %v206 = vpop.f32.mrb[0].mxu0
  %v207 = vadd.f32 0.0, %v206
  %v208 = vpop.f32.mrb[0].mxu0
  %209 = vmatprep.mubr.f32.mxu0 0.0
  %210 = vmatmul.mubr.f32.gmra.mrb[0].mxu0 %v88
  %v211 = vpop.f32.mrb[0].mxu0
  %v212 = vadd.f32 0.0, %v211
  %v213 = vpop.f32.mrb[0].mxu0
  %214 = vmatprep.mubr.f32.mxu0 0.0
  %215 = vmatmul.mubr.f32.gmra.mrb[0].mxu0 %v91
  %v216 = vpop.f32.mrb[0].mxu0
  %v217 = vadd.f32 0.0, %v216
  %v218 = vpop.f32.mrb[0].mxu0
  %219 = vmatprep.mubr.f32.mxu0 0.0
  %220 = vmatmul.mubr.f32.gmra.mrb[0].mxu0 %v94
  %v221 = vpop.f32.mrb[0].mxu0
  %v222 = vadd.f32 0.0, %v221
  %v223 = vpop.f32.mrb[0].mxu0
  %224 = vmatprep.mubr.f32.mxu0 0.0
  %225 = vmatmul.mubr.f32.gmra.mrb[0].mxu0 %v97
  %v226 = vpop.f32.mrb[0].mxu0
  %v227 = vadd.f32 0.0, %v226
  %v228 = vpop.f32.mrb[0].mxu0
  %229 = vmatprep.mubr.f32.mxu0 0.0
  %230 = vmatmul.mubr.f32.gmra.mrb[0].mxu0 %v100
  %v231 = vpop.f32.mrb[0].mxu0
  %v232 = vadd.f32 0.0, %v231
  %v233 = vpop.f32.mrb[0].mxu0
  %234 = vmatprep.mubr.f32.mxu0 0.0
  %235 = vmatmul.mubr.f32.gmra.mrb[0].mxu0 %v103
  %v236 = vpop.f32.mrb[0].mxu0
  %v237 = vadd.f32 0.0, %v236
  %v238 = vpop.f32.mrb[0].mxu0
  %239 = vmatprep.mubr.f32.mxu0 0.0
  %240 = vmatmul.mubr.f32.gmra.mrb[0].mxu0 %v106
  %v241 = vpop.f32.mrb[0].mxu0
  %v242 = vadd.f32 0.0, %v241
  %v243 = vpop.f32.mrb[0].mxu0
  %244 = vmatprep.mubr.f32.mxu0 0.0
  %245 = vmatmul.mubr.f32.gmra.mrb[0].mxu0 %v109
  %v246 = vpop.f32.mrb[0].mxu0
  %v247 = vadd.f32 0.0, %v246
  %v248 = vpop.f32.mrb[0].mxu0
  %249 = vmatprep.mubr.f32.mxu0 0.0
  %250 = vmatmul.mubr.f32.gmra.mrb[0].mxu0 %v112
  %v251 = vpop.f32.mrb[0].mxu0
  %v252 = vadd.f32 0.0, %v251
  %v253 = vpop.f32.mrb[0].mxu0
  %254 = vmatprep.mubr.f32.mxu0 0.0
  %255 = vmatmul.mubr.f32.gmra.mrb[0].mxu0 %v115
  %v256 = vpop.f32.mrb[0].mxu0
  %v257 = vadd.f32 0.0, %v256
  %v258 = vpop.f32.mrb[0].mxu0
  %259 = vmatprep.mubr.f32.mxu0 0.0
  %260 = vmatmul.mubr.f32.gmra.mrb[0].mxu0 %v118
  %v261 = vpop.f32.mrb[0].mxu0
  %v262 = vadd.f32 0.0, %v261
  %v263 = vpop.f32.mrb[0].mxu0
  %264 = vdwg.mxu0
  %v265 = vadd.f32 %v35, %v187
  %v266 = vadd.f32 %v36, %v192
  %v267 = vadd.f32 %v37, %v197
  %v268 = vadd.f32 %v38, %v202
  %v269 = vadd.f32 %v39, %v207
  %v270 = vadd.f32 %v40, %v212
  %v271 = vadd.f32 %v41, %v217
  %v272 = vadd.f32 %v42, %v222
  %v273 = vadd.f32 %v43, %v227
  %v274 = vadd.f32 %v44, %v232
  %v275 = vadd.f32 %v45, %v237
  %v276 = vadd.f32 %v46, %v242
  %v277 = vadd.f32 %v47, %v247
  %v278 = vadd.f32 %v48, %v252
  %v279 = vadd.f32 %v49, %v257
  %v280 = vadd.f32 %v50, %v262
  %vm281 = vcmask 785408
  %282 = vst.msk [vmem:[#allocation2] sm:$0xff] %vm281, %v265
  %283 = vst.msk [vmem:[#allocation2 + $0x8] sm:$0xff] %vm281, %v266
  %284 = vst.msk [vmem:[#allocation2 + $0x10] sm:$0xff] %vm281, %v267
  %285 = vst.msk [vmem:[#allocation2 + $0x18] sm:$0xff] %vm281, %v268
  %286 = vst.msk [vmem:[#allocation2 + $0x20] sm:$0xff] %vm281, %v269
  %287 = vst.msk [vmem:[#allocation2 + $0x28] sm:$0xff] %vm281, %v270
  %288 = vst.msk [vmem:[#allocation2 + $0x30] sm:$0xff] %vm281, %v271
  %289 = vst.msk [vmem:[#allocation2 + $0x38] sm:$0xff] %vm281, %v272
  %290 = vst.msk [vmem:[#allocation2 + $0x40] sm:$0xff] %vm281, %v273
  %291 = vst.msk [vmem:[#allocation2 + $0x48] sm:$0xff] %vm281, %v274
  %292 = vst.msk [vmem:[#allocation2 + $0x50] sm:$0xff] %vm281, %v275
  %293 = vst.msk [vmem:[#allocation2 + $0x58] sm:$0xff] %vm281, %v276
  %294 = vst.msk [vmem:[#allocation2 + $0x60] sm:$0xff] %vm281, %v277
  %295 = vst.msk [vmem:[#allocation2 + $0x68] sm:$0xff] %vm281, %v278
  %296 = vst.msk [vmem:[#allocation2 + $0x70] sm:$0xff] %vm281, %v279
  %297 = vst.msk [vmem:[#allocation2 + $0x78] sm:$0xff] %vm281, %v280
  // Predicated region
  $region18: #{tpu_custom_call.1} parent=0 // pred_check
    %p298 = pneg %p14
  $region19: #{tpu_custom_call.1} parent=0 // pred_check_branch
    %300 = sbr.rel (%p298) target = $region21
  $region20: #{tpu_custom_call.1} parent=0 // pred_region
    %v301 = vld [vmem:[#allocation2] sm:$0xff]
    %v302 = vld [vmem:[#allocation2 + $0x8] sm:$0xff]
    %v303 = vld [vmem:[#allocation2 + $0x10] sm:$0xff]
    %v304 = vld [vmem:[#allocation2 + $0x18] sm:$0xff]
    %v305 = vld [vmem:[#allocation2 + $0x20] sm:$0xff]
    %v306 = vld [vmem:[#allocation2 + $0x28] sm:$0xff]
    %v307 = vld [vmem:[#allocation2 + $0x30] sm:$0xff]
    %v308 = vld [vmem:[#allocation2 + $0x38] sm:$0xff]
    %v309 = vld [vmem:[#allocation2 + $0x40] sm:$0xff]
    %v310 = vld [vmem:[#allocation2 + $0x48] sm:$0xff]
    %v311 = vld [vmem:[#allocation2 + $0x50] sm:$0xff]
    %v312 = vld [vmem:[#allocation2 + $0x58] sm:$0xff]
    %v313 = vld [vmem:[#allocation2 + $0x60] sm:$0xff]
    %v314 = vld [vmem:[#allocation2 + $0x68] sm:$0xff]
    %v315 = vld [vmem:[#allocation2 + $0x70] sm:$0xff]
    %v316 = vld [vmem:[#allocation2 + $0x78] sm:$0xff]
    %v317 = vld [vmem:[%s2] sm:$0x1]
    %v319 = vlaneseq
    %v320 = vshrl.u32 %v319, 7
    %v321 = vsub.s32 0, %v320
    %v322 = vrot.slane %v317, %v321
    %v324 = vadd.f32 %v301, %v322
    %v325 = vadd.f32 %v302, %v322
    %v326 = vadd.f32 %v303, %v322
    %v327 = vadd.f32 %v304, %v322
    %v328 = vadd.f32 %v305, %v322
    %v329 = vadd.f32 %v306, %v322
    %v330 = vadd.f32 %v307, %v322
    %v331 = vadd.f32 %v308, %v322
    %v332 = vadd.f32 %v309, %v322
    %v333 = vadd.f32 %v310, %v322
    %v334 = vadd.f32 %v311, %v322
    %v335 = vadd.f32 %v312, %v322
    %v336 = vadd.f32 %v313, %v322
    %v337 = vadd.f32 %v314, %v322
    %v338 = vadd.f32 %v315, %v322
    %v339 = vadd.f32 %v316, %v322
    %340 = vst.msk [vmem:[%s3] sm:$0xff] %vm281, %v324
    %341 = vst.msk [vmem:[%s3 + $0x8] sm:$0xff] %vm281, %v325
    %342 = vst.msk [vmem:[%s3 + $0x10] sm:$0xff] %vm281, %v326
    %343 = vst.msk [vmem:[%s3 + $0x18] sm:$0xff] %vm281, %v327
    %344 = vst.msk [vmem:[%s3 + $0x20] sm:$0xff] %vm281, %v328
    %345 = vst.msk [vmem:[%s3 + $0x28] sm:$0xff] %vm281, %v329
    %346 = vst.msk [vmem:[%s3 + $0x30] sm:$0xff] %vm281, %v330
    %347 = vst.msk [vmem:[%s3 + $0x38] sm:$0xff] %vm281, %v331
    %348 = vst.msk [vmem:[%s3 + $0x40] sm:$0xff] %vm281, %v332
    %349 = vst.msk [vmem:[%s3 + $0x48] sm:$0xff] %vm281, %v333
    %350 = vst.msk [vmem:[%s3 + $0x50] sm:$0xff] %vm281, %v334
    %351 = vst.msk [vmem:[%s3 + $0x58] sm:$0xff] %vm281, %v335
    %352 = vst.msk [vmem:[%s3 + $0x60] sm:$0xff] %vm281, %v336
    %353 = vst.msk [vmem:[%s3 + $0x68] sm:$0xff] %vm281, %v337
    %354 = vst.msk [vmem:[%s3 + $0x70] sm:$0xff] %vm281, %v338
    %355 = vst.msk [vmem:[%s3 + $0x78] sm:$0xff] %vm281, %v339
  $region21: #{tpu_custom_call.1} parent=0 // pred_fallthru
    _
  // Predicated region
  $region22: #{tpu_custom_call.1} parent=0 // pred_check
    _
  $region23: #{tpu_custom_call.1} parent=0 // pred_check_branch
    %357 = sbr.rel (0) target = $region25
  $region24: #{tpu_custom_call.1} parent=0 // pred_region
    _
  $region25: #{tpu_custom_call.1} parent=0 // pred_fallthru
    _
  // Predicated region
  $region26: #{tpu_custom_call.1} parent=0 // pred_check
    _
  $region27: #{tpu_custom_call.1} parent=0 // pred_check_branch
    %359 = sbr.rel (0) target = $region29
  $region28: #{tpu_custom_call.1} parent=0 // pred_region
    _
  $region29: #{tpu_custom_call.1} parent=0 // pred_fallthru
    _

</llo_original>
